<compile_context>
chip_gen: v6e
topology: v6e:2x2x1
jax: 0.10.0
libtpu: 0.0.40
codegen_flags: <defaults>
</compile_context>

<pallas_src>
import math

import jax
import jax.numpy as jnp
from jax.experimental import pallas as pl
from jax.experimental.pallas import tpu as pltpu


def _user_embedding_kernel(emb_ref, out_ref):
    # Pure pass-through of the parameter (the module's forward returns the
    # embedding unchanged, independent of `input`).
    out_ref[...] = emb_ref[...]


def user_embedding_forward(embedding: jax.Array, x: jax.Array) -> jax.Array:
    """Mirror of UserEmbedding.forward: `x` is accepted but unused."""
    del x  # forward() ignores its input, exactly like the PyTorch module
    return pl.pallas_call(
        _user_embedding_kernel,
        out_shape=jax.ShapeDtypeStruct(embedding.shape, embedding.dtype),
        # Gridless, single full-array block (shape == array dims, so the
        # (8, 128) divisibility rule does not apply).
        in_specs=[pl.BlockSpec(memory_space=pltpu.MemorySpace.VMEM)],
        out_specs=pl.BlockSpec(memory_space=pltpu.MemorySpace.VMEM),
        # Output buffer aliases the embedding input: no new HBM allocation
        # when the parameter is donated by the surrounding jit.
        input_output_aliases={0: 0},
    )(embedding)


def init_user_embedding(key: jax.Array, num_latent_factors: int) -> jax.Array:
    """Deterministic kaiming_uniform_ init of the (1, num_latent_factors) param.

    torch.nn.init.kaiming_uniform_ default: a=0, fan_in = num_latent_factors,
    gain = sqrt(2), bound = gain * sqrt(3 / fan_in) = sqrt(6 / fan_in).
    """
    fan_in = num_latent_factors
    gain = math.sqrt(2.0)
    bound = gain * math.sqrt(3.0 / fan_in)
    return jax.random.uniform(
        key, (1, num_latent_factors), dtype=jnp.float32, minval=-bound, maxval=bound
    )


if __name__ == "__main__":
    key = jax.random.PRNGKey(0)
    k_emb, k_x = jax.random.split(key)

    num_latent_factors = 32
    embedding = init_user_embedding(k_emb, num_latent_factors)

    # Dummy "input" — forward ignores it (e.g. a small batch of user indices).
    x = jax.random.randint(k_x, (2,), 0, 100)

    out = user_embedding_forward(embedding, x)
    out = jax.block_until_ready(out)

    # Sanity-check against the trivially correct reference (identity on param).
    assert out.shape == (1, num_latent_factors)
    assert out.dtype == jnp.float32
    assert jnp.array_equal(out, embedding)

    print("KERNEL_OK")
</pallas_src>

<mosaic_0001>
module attributes {stable_mosaic.version = 11 : i64} {
  func.func @_user_embedding_kernel(%arg0: memref<1x32xf32, #tpu.memory_space<vmem>>, %arg1: memref<1x32xf32, #tpu.memory_space<vmem>>) attributes {dimension_semantics = [], scalar_prefetch = 0 : i64, scratch_operands = 0 : i64, tpu.core_type = #tpu.core_type<tc>} {
    %c0 = arith.constant 0 : index
    %c0_0 = arith.constant 0 : index
    %0 = vector.load %arg0[%c0, %c0_0] : memref<1x32xf32, #tpu.memory_space<vmem>>, vector<1x32xf32>
    %c0_1 = arith.constant 0 : index
    %c0_2 = arith.constant 0 : index
    %1 = vector.load %arg1[%c0_1, %c0_2] : memref<1x32xf32, #tpu.memory_space<vmem>>, vector<1x32xf32>
    tpu.vector_store %arg1[%c0_1, %c0_2], %0 {strides = array<i32>} : memref<1x32xf32, #tpu.memory_space<vmem>>, vector<1x32xf32>,
    return
  }
}

</mosaic_0001>

<llo_original>
// kernel: tpu_custom_call.1
$region0: #{tpu_custom_call.1}
  #allocation0 [shape = 'u32[]', space=smem, size = 0x4, offset = 0x4, fixed_abs, tag = 'smem constant byte address 0x4 - core index']
  #allocation1 [shape = 'u32[144,128]{1,0:T(1,128)}', space=vmem, size = 0x12000, scoped, tag = 'internal scratch']
  %s0 = inlined_call_operand.hbm [shape: f32[1,32], index: 0, kind: input, shape index: {}, may-alias: {0,1}]
  %s1 = inlined_call_operand.hbm [shape: f32[1,32], index: 1, kind: output, shape index: {}, may-alias: {0,1}]
  %s2 = sld [smem:[#allocation0]]
  $region18: #{tpu_custom_call.1} parent=0
    _
  %s4 = ssub.s32 1, %s2
  %s5 = scalar_select 0, %s4, %s2
  $region1: #{tpu_custom_call.1} parent=0
    #allocation2 [shape = 'u8[512]{0}', space=vmem, size = 0x400, scoped, tag = 'input window, operand 0, single buffered']
    #allocation3 [shape = 's32[1]{0}', space=sflag, size = 0x4, scoped, tag = 'scoped memory for tpu_custom_call.1']
    #allocation4 [shape = 's32[1]{0}', space=sflag, size = 0x4, scoped, tag = 'scoped memory for tpu_custom_call.1']
    #allocation5 [shape = 'u8[512]{0}', space=vmem, size = 0x400, scoped, tag = 'output window, operand 0, single buffered']
    %6 = vsyncpa [#allocation3], 0
    %7 = vsyncpa [#allocation4], 0
    // Predicated region
    $region2: #{tpu_custom_call.1} parent=1 // pred_check
      _
    $region3: #{tpu_custom_call.1} parent=1 // pred_check_branch
      %9 = sbr.rel (0) target = $region5
    $region4: #{tpu_custom_call.1} parent=1 // pred_region
      %s11 = ssub.s32 16, 16
      %12 = vsyncadd [#allocation3], %s11
      %s14 = sshll.u32 [#allocation2], 4
      %s15 = int_to_ptr.vmem [resolvable:$true] %s14
      %17 = dma.hbm_to_vmem [thread:$0]  %s0, 16, %s15, [#allocation3]
    $region5: #{tpu_custom_call.1} parent=1 // pred_fallthru
      _
    // Predicated region
    $region6: #{tpu_custom_call.1} parent=1 // pred_check
      _
    $region7: #{tpu_custom_call.1} parent=1 // pred_check_branch
      %19 = sbr.rel (0) target = $region9
    $region8: #{tpu_custom_call.1} parent=1 // pred_region
      %20 = dma.done [#allocation3], 16
    $region9: #{tpu_custom_call.1} parent=1 // pred_fallthru
      _
    %v21 = vld [vmem:[#allocation2] sm:$0x1]
    %vm22 = vcmask 253952
    %23 = vst.msk [vmem:[#allocation5] sm:$0x1] %vm22, %v21
    // Predicated region
    $region10: #{tpu_custom_call.1} parent=1 // pred_check
      _
    $region11: #{tpu_custom_call.1} parent=1 // pred_check_branch
      %25 = sbr.rel (0) target = $region13
    $region12: #{tpu_custom_call.1} parent=1 // pred_region
      %s27 = ssub.s32 16, 16
      %28 = vsyncadd [#allocation4], %s27
      %s30 = sshll.u32 [#allocation5], 4
      %s31 = int_to_ptr.vmem [resolvable:$true] %s30
      %33 = dma.vmem_to_hbm [thread:$0]  %s31, 16, %s1, [#allocation4]
    $region13: #{tpu_custom_call.1} parent=1 // pred_fallthru
      _
    // Predicated region
    $region14: #{tpu_custom_call.1} parent=1 // pred_check
      _
    $region15: #{tpu_custom_call.1} parent=1 // pred_check_branch
      %35 = sbr.rel (0) target = $region17
    $region16: #{tpu_custom_call.1} parent=1 // pred_region
      %36 = dma.done [#allocation4], 16
    $region17: #{tpu_custom_call.1} parent=1 // pred_fallthru
      _
    %37 = vsyncpa [#allocation3], 1
    %38 = vsyncpa [#allocation4], 1

</llo_original>
